<compile_context>
chip_gen: v6e
topology: v6e:2x2x1
jax: 0.10.0
libtpu: 0.0.40
codegen_flags: <defaults>
</compile_context>

<pallas_src>
import functools

import jax
import jax.numpy as jnp
import numpy as np
from jax.experimental import pallas as pl
from jax.experimental.pallas import tpu as pltpu


# ------------------------- pass 1: fused norm stats -------------------------

def _stats_kernel(x_ref, g_ref, be_ref, scale_ref, shift_ref,
                  sum_ref, sumsq_ref, *, n_inv):
    """Accumulate per-(b, c) moments over N tiles, then emit the fused affine.

    x_ref:   (B, C, nt)  tile of x_up in native (B, C, N) layout
    g_ref:   (1, C, 1)   SyncBatchNorm gamma
    be_ref:  (1, C, 1)   SyncBatchNorm beta
    outputs: scale/shift (B, C, 1) such that
             ReLU(BN(IN(x))) == ReLU(x * scale + shift)      (exact algebra)
    """
    step = pl.program_id(0)

    @pl.when(step == 0)
    def _():
        sum_ref[...] = jnp.zeros_like(sum_ref)
        sumsq_ref[...] = jnp.zeros_like(sumsq_ref)

    x = x_ref[...]                                            # (B, C, nt) f32
    sum_ref[...] += jnp.sum(x, axis=2, keepdims=True)         # (B, C, 1)
    sumsq_ref[...] += jnp.sum(x * x, axis=2, keepdims=True)   # (B, C, 1)

    @pl.when(step == pl.num_programs(0) - 1)
    def _():
        mean_i = sum_ref[...] * n_inv                         # (B, C, 1)
        var_i = sumsq_ref[...] * n_inv - mean_i * mean_i      # biased variance
        # Guard against catastrophic cancellation of E[x^2]-E[x]^2 in f32.
        var_i = jnp.maximum(var_i, 0.0)
        inv_i = jax.lax.rsqrt(var_i + 1e-3)                   # InstanceNorm eps

        # Training-mode SyncBatchNorm stats of the instance-normalized tensor:
        # per-(b,c) mean over N of y is exactly 0  =>  batch mean == 0;
        # batch var == mean_b[ var_i / (var_i + eps_inst) ].
        var_b = jnp.mean(var_i * inv_i * inv_i, axis=0, keepdims=True)  # (1,C,1)
        inv_b = jax.lax.rsqrt(var_b + 1e-5)                   # BatchNorm eps

        sc = inv_i * (g_ref[...] * inv_b)                     # (B, C, 1)
        scale_ref[...] = sc
        shift_ref[...] = be_ref[...] - mean_i * sc


# ------------------- pass 2: apply + conv + softmax + unpool -----------------

def _apply_kernel(x_ref, scale_ref, shift_ref, w_ref, cb_ref, xd_ref, o_ref):
    """x:(C,nt) scale/shift:(C,1) w:(P,C) cb:(P,1) xd:(D,P) -> o:(D,nt).

    Batch dim is squeezed away by the BlockSpec (B lives on the grid), so the
    body is pure 2-D: one FMA+ReLU for the whole norm chain, two plain MXU dots
    (bf16 operands, f32 accumulation), and a sublane softmax over P.
    """
    # InstanceNorm + BatchNorm + affine chain as a single FMA, then ReLU (f32).
    z = jnp.maximum(x_ref[...] * scale_ref[...] + shift_ref[...], 0.0)   # (C, nt)

    # 1x1 conv: (P, C) @ (C, nt) on the MXU, bf16 operands, f32 accumulate.
    e = jnp.dot(w_ref[...].astype(jnp.bfloat16), z.astype(jnp.bfloat16),
                preferred_element_type=jnp.float32) + cb_ref[...]        # (P, nt)

    # Softmax over the output_points axis (sublanes, XLU reduce).
    m = jnp.max(e, axis=0, keepdims=True)                                # (1, nt)
    pexp = jnp.exp(e - m)
    denom = jnp.sum(pexp, axis=0, keepdims=True)
    s = pexp * pl.reciprocal(denom, approx=True)                         # (P, nt)

    # Unpool: (D, P) @ (P, nt) on the MXU; lane-dense (nt-wide) store.
    o_ref[...] = jnp.dot(xd_ref[...].astype(jnp.bfloat16),
                         s.astype(jnp.bfloat16),
                         preferred_element_type=jnp.float32).astype(o_ref.dtype)


# ---------------------------------- wrapper ----------------------------------

def _pick_tile(n, max_tile):
    """Largest lane-friendly N tile: full N if it fits, else the biggest
    multiple of 128 that divides N and is <= max_tile, else full N."""
    if n <= max_tile:
        return n
    t = (max_tile // 128) * 128
    while t >= 128:
        if n % t == 0:
            return t
        t -= 128
    return n   # TODO(synk): ragged N (no 128-multiple divisor) falls back to one full-N block.


def diff_unpool_forward(x_up, x_down, params, *,
                        max_stats_tile=2048, max_apply_tile=512):
    """x_up: (B, C, N, 1), x_down: (B, D, P, 1) -> (B, D, N, 1)."""
    B, C, N, W = x_up.shape
    assert W == 1
    P = params["w"].shape[0]
    Bd, D, Pd, Wd = x_down.shape
    assert Wd == 1 and Bd == B and Pd == P

    # Native layouts: N (points) on the lane axis everywhere -> no transposes.
    x = x_up[..., 0].astype(jnp.float32)                       # (B, C, N)
    xd = x_down[..., 0].astype(jnp.float32)                    # (B, D, P)
    gamma = params["gamma"].reshape(1, C, 1).astype(jnp.float32)
    beta = params["beta"].reshape(1, C, 1).astype(jnp.float32)
    w = params["w"].reshape(P, C).astype(jnp.float32)           # (P, C)
    cb = params["cb"].reshape(P, 1).astype(jnp.float32)         # (P, 1)

    # ---- pass 1: per-(b, c) fused norm scale / shift (big streaming tiles) ----
    nt1 = _pick_tile(N, max_stats_tile)
    scale, shift = pl.pallas_call(
        functools.partial(_stats_kernel, n_inv=1.0 / float(N)),
        out_shape=(jax.ShapeDtypeStruct((B, C, 1), jnp.float32),
                   jax.ShapeDtypeStruct((B, C, 1), jnp.float32)),
        grid=(N // nt1,),
        in_specs=[pl.BlockSpec((B, C, nt1), lambda i: (0, 0, i)),
                  pl.BlockSpec((1, C, 1), lambda i: (0, 0, 0)),
                  pl.BlockSpec((1, C, 1), lambda i: (0, 0, 0))],
        out_specs=(pl.BlockSpec((B, C, 1), lambda i: (0, 0, 0)),
                   pl.BlockSpec((B, C, 1), lambda i: (0, 0, 0))),
        scratch_shapes=[pltpu.VMEM((B, C, 1), jnp.float32),
                        pltpu.VMEM((B, C, 1), jnp.float32)],
        compiler_params=pltpu.CompilerParams(
            dimension_semantics=("arbitrary",)),
    )(x, gamma, beta)

    # ---- pass 2: normalize + conv1x1 + softmax + unpool (B x N-tile grid) ----
    nt2 = _pick_tile(N, max_apply_tile)
    out = pl.pallas_call(
        _apply_kernel,
        out_shape=jax.ShapeDtypeStruct((B, D, N), jnp.float32),
        grid=(B, N // nt2),
        in_specs=[pl.BlockSpec((None, C, nt2), lambda b, i: (b, 0, i)),
                  pl.BlockSpec((None, C, 1), lambda b, i: (b, 0, 0)),
                  pl.BlockSpec((None, C, 1), lambda b, i: (b, 0, 0)),
                  pl.BlockSpec((P, C), lambda b, i: (0, 0)),
                  pl.BlockSpec((P, 1), lambda b, i: (0, 0)),
                  pl.BlockSpec((None, D, P), lambda b, i: (b, 0, 0))],
        out_specs=pl.BlockSpec((None, D, nt2), lambda b, i: (b, 0, i)),
        compiler_params=pltpu.CompilerParams(
            dimension_semantics=("parallel", "parallel")),
    )(x, scale, shift, w, cb, xd)

    return out[..., None]                                       # (B, D, N, 1)


# ----------------------------- pure-JAX reference ----------------------------

def diff_unpool_ref(x_up, x_down, p):
    hp = jax.lax.Precision.HIGHEST
    x = x_up[..., 0]                                           # (B, C, N)

    # InstanceNorm2d(eps=1e-3), affine=False
    mu_i = x.mean(axis=2, keepdims=True)
    var_i = ((x - mu_i) ** 2).mean(axis=2, keepdims=True)
    y = (x - mu_i) / jnp.sqrt(var_i + 1e-3)

    # SyncBatchNorm (train mode, single device): biased batch stats + affine
    mu_b = y.mean(axis=(0, 2), keepdims=True)
    var_b = ((y - mu_b) ** 2).mean(axis=(0, 2), keepdims=True)
    z = jax.nn.relu((y - mu_b) / jnp.sqrt(var_b + 1e-5)
                    * p["gamma"][None, :, None] + p["beta"][None, :, None])

    embed = jnp.einsum("pc,bcn->bpn", p["w"], z, precision=hp) + p["cb"][None, :, None]
    S = jax.nn.softmax(embed, axis=1)                          # (B, P, N)
    out = jnp.einsum("bdp,bpn->bdn", x_down[..., 0], S, precision=hp)
    return out[..., None]                                      # (B, D, N, 1)


# ------------------------------------ main -----------------------------------

if __name__ == "__main__":
    # batch, in_channel, points, output_points, x_down channels.
    # N=1024 keeps the problem tiny but exercises real tiling (512-lane tiles,
    # a (2, 2) parallel grid for pass 2 and a single streaming step for pass 1).
    B, C, N, P, D = 2, 4, 1024, 8, 6
    key = jax.random.PRNGKey(0)
    ks = jax.random.split(key, 6)

    params = {
        "gamma": 1.0 + 0.1 * jax.random.normal(ks[0], (C,), jnp.float32),
        "beta":        0.1 * jax.random.normal(ks[1], (C,), jnp.float32),
        "w":           0.3 * jax.random.normal(ks[2], (P, C), jnp.float32),
        "cb":          0.1 * jax.random.normal(ks[3], (P,), jnp.float32),
    }
    x_up = jax.random.normal(ks[4], (B, C, N, 1), jnp.float32)
    x_down = jax.random.normal(ks[5], (B, D, P, 1), jnp.float32)

    out = jax.block_until_ready(diff_unpool_forward(x_up, x_down, params))
    ref = jax.block_until_ready(diff_unpool_ref(x_up, x_down, params))

    assert out.shape == (B, D, N, 1)
    # Kernel matmuls use bf16 MXU operands (f32 accumulation) plus an EUP
    # approx reciprocal in the softmax; the reference uses Precision.HIGHEST,
    # so allow bf16-MXU-level tolerance.
    np.testing.assert_allclose(np.asarray(out), np.asarray(ref),
                               atol=3e-2, rtol=3e-2)
    print("KERNEL_OK")
</pallas_src>

<mosaic_0001>
module attributes {stable_mosaic.version = 11 : i64} {
  func.func @_stats_kernel(%arg0: i32, %arg1: memref<2x4x1024xf32, #tpu.memory_space<vmem>>, %arg2: memref<1x4x1xf32, #tpu.memory_space<vmem>>, %arg3: memref<1x4x1xf32, #tpu.memory_space<vmem>>, %arg4: memref<2x4x1xf32, #tpu.memory_space<vmem>>, %arg5: memref<2x4x1xf32, #tpu.memory_space<vmem>>, %arg6: memref<2x4x1xf32, #tpu.memory_space<vmem>>, %arg7: memref<2x4x1xf32, #tpu.memory_space<vmem>>) attributes {dimension_semantics = [#tpu.dimension_semantics<arbitrary>], iteration_bounds = array<i64: 1>, scalar_prefetch = 0 : i64, scratch_operands = 2 : i64, tpu.core_type = #tpu.core_type<tc>, window_params = [{transform_indices = @transform_0, window_bounds = array<i64: 2, 4, 1024>}, {pipeline_mode = #tpu.pipeline_mode<synchronous>, transform_indices = @transform_1, window_bounds = array<i64: 1, 4, 1>}, {pipeline_mode = #tpu.pipeline_mode<synchronous>, transform_indices = @transform_2, window_bounds = array<i64: 1, 4, 1>}, {pipeline_mode = #tpu.pipeline_mode<synchronous>, transform_indices = @transform_3, window_bounds = array<i64: 2, 4, 1>}, {pipeline_mode = #tpu.pipeline_mode<synchronous>, transform_indices = @transform_4, window_bounds = array<i64: 2, 4, 1>}]} {
    %c0_i32 = arith.constant 0 : i32
    %0 = arith.cmpi eq, %arg0, %c0_i32 : i32
    %1 = arith.extui %0 : i1 to i32
    %c0_i32_0 = arith.constant 0 : i32
    %2 = arith.cmpi ne, %1, %c0_i32_0 : i32
    scf.if %2 {
      %cst_18 = arith.constant 0.000000e+00 : f32
      %18 = vector.broadcast %cst_18 : f32 to vector<2x4x1xf32>
      %c0_19 = arith.constant 0 : index
      %c0_20 = arith.constant 0 : index
      %c0_21 = arith.constant 0 : index
      %19 = vector.load %arg6[%c0_19, %c0_20, %c0_21] : memref<2x4x1xf32, #tpu.memory_space<vmem>>, vector<2x4x1xf32>
      tpu.vector_store %arg6[%c0_19, %c0_20, %c0_21], %18 {strides = array<i32>} : memref<2x4x1xf32, #tpu.memory_space<vmem>>, vector<2x4x1xf32>,
      %cst_22 = arith.constant 0.000000e+00 : f32
      %20 = vector.broadcast %cst_22 : f32 to vector<2x4x1xf32>
      %c0_23 = arith.constant 0 : index
      %c0_24 = arith.constant 0 : index
      %c0_25 = arith.constant 0 : index
      %21 = vector.load %arg7[%c0_23, %c0_24, %c0_25] : memref<2x4x1xf32, #tpu.memory_space<vmem>>, vector<2x4x1xf32>
      tpu.vector_store %arg7[%c0_23, %c0_24, %c0_25], %20 {strides = array<i32>} : memref<2x4x1xf32, #tpu.memory_space<vmem>>, vector<2x4x1xf32>,
    } else {
    }
    %c0 = arith.constant 0 : index
    %c0_1 = arith.constant 0 : index
    %c0_2 = arith.constant 0 : index
    %3 = vector.load %arg1[%c0, %c0_1, %c0_2] : memref<2x4x1024xf32, #tpu.memory_space<vmem>>, vector<2x4x1024xf32>
    %c0_3 = arith.constant 0 : index
    %c0_4 = arith.constant 0 : index
    %c0_5 = arith.constant 0 : index
    %4 = vector.load %arg6[%c0_3, %c0_4, %c0_5] : memref<2x4x1xf32, #tpu.memory_space<vmem>>, vector<2x4x1xf32>
    %cst = arith.constant dense<0.000000e+00> : vector<2x4xf32>
    %5 = vector.multi_reduction <add>, %3, %cst [2] : vector<2x4x1024xf32> to vector<2x4xf32>
    %6 = vector.shape_cast %5 : vector<2x4xf32> to vector<2x4x1xf32>
    %7 = arith.addf %4, %6 : vector<2x4x1xf32>
    %c0_6 = arith.constant 0 : index
    %c0_7 = arith.constant 0 : index
    %c0_8 = arith.constant 0 : index
    %8 = vector.load %arg6[%c0_6, %c0_7, %c0_8] : memref<2x4x1xf32, #tpu.memory_space<vmem>>, vector<2x4x1xf32>
    tpu.vector_store %arg6[%c0_6, %c0_7, %c0_8], %7 {strides = array<i32>} : memref<2x4x1xf32, #tpu.memory_space<vmem>>, vector<2x4x1xf32>,
    %c0_9 = arith.constant 0 : index
    %c0_10 = arith.constant 0 : index
    %c0_11 = arith.constant 0 : index
    %9 = vector.load %arg7[%c0_9, %c0_10, %c0_11] : memref<2x4x1xf32, #tpu.memory_space<vmem>>, vector<2x4x1xf32>
    %10 = arith.mulf %3, %3 : vector<2x4x1024xf32>
    %cst_12 = arith.constant dense<0.000000e+00> : vector<2x4xf32>
    %11 = vector.multi_reduction <add>, %10, %cst_12 [2] : vector<2x4x1024xf32> to vector<2x4xf32>
    %12 = vector.shape_cast %11 : vector<2x4xf32> to vector<2x4x1xf32>
    %13 = arith.addf %9, %12 : vector<2x4x1xf32>
    %c0_13 = arith.constant 0 : index
    %c0_14 = arith.constant 0 : index
    %c0_15 = arith.constant 0 : index
    %14 = vector.load %arg7[%c0_13, %c0_14, %c0_15] : memref<2x4x1xf32, #tpu.memory_space<vmem>>, vector<2x4x1xf32>
    tpu.vector_store %arg7[%c0_13, %c0_14, %c0_15], %13 {strides = array<i32>} : memref<2x4x1xf32, #tpu.memory_space<vmem>>, vector<2x4x1xf32>,
    %c0_i32_16 = arith.constant 0 : i32
    %15 = arith.cmpi eq, %arg0, %c0_i32_16 : i32
    %16 = arith.extui %15 : i1 to i32
    %c0_i32_17 = arith.constant 0 : i32
    %17 = arith.cmpi ne, %16, %c0_i32_17 : i32
    scf.if %17 {
      %c0_18 = arith.constant 0 : index
      %c0_19 = arith.constant 0 : index
      %c0_20 = arith.constant 0 : index
      %18 = vector.load %arg6[%c0_18, %c0_19, %c0_20] : memref<2x4x1xf32, #tpu.memory_space<vmem>>, vector<2x4x1xf32>
      %cst_21 = arith.constant 9.765625E-4 : f32
      %19 = vector.broadcast %cst_21 : f32 to vector<2x4x1xf32>
      %20 = arith.mulf %18, %19 : vector<2x4x1xf32>
      %c0_22 = arith.constant 0 : index
      %c0_23 = arith.constant 0 : index
      %c0_24 = arith.constant 0 : index
      %21 = vector.load %arg7[%c0_22, %c0_23, %c0_24] : memref<2x4x1xf32, #tpu.memory_space<vmem>>, vector<2x4x1xf32>
      %cst_25 = arith.constant 9.765625E-4 : f32
      %22 = vector.broadcast %cst_25 : f32 to vector<2x4x1xf32>
      %23 = arith.mulf %21, %22 : vector<2x4x1xf32>
      %24 = arith.mulf %20, %20 : vector<2x4x1xf32>
      %25 = arith.subf %23, %24 : vector<2x4x1xf32>
      %cst_26 = arith.constant 0.000000e+00 : f32
      %26 = vector.broadcast %cst_26 : f32 to vector<2x4x1xf32>
      %27 = arith.maximumf %25, %26 : vector<2x4x1xf32>
      %cst_27 = arith.constant 1.000000e-03 : f32
      %28 = vector.broadcast %cst_27 : f32 to vector<2x4x1xf32>
      %29 = arith.addf %27, %28 : vector<2x4x1xf32>
      %30 = math.rsqrt %29 : vector<2x4x1xf32>
      %31 = arith.mulf %27, %30 : vector<2x4x1xf32>
      %32 = arith.mulf %31, %30 : vector<2x4x1xf32>
      %cst_28 = arith.constant dense<0.000000e+00> : vector<4x1xf32>
      %33 = vector.multi_reduction <add>, %32, %cst_28 [0] : vector<2x4x1xf32> to vector<4x1xf32>
      %34 = vector.shape_cast %33 : vector<4x1xf32> to vector<1x4x1xf32>
      %cst_29 = arith.constant 2.000000e+00 : f32
      %35 = vector.broadcast %cst_29 : f32 to vector<1x4x1xf32>
      %36 = arith.divf %34, %35 : vector<1x4x1xf32>
      %cst_30 = arith.constant 9.99999974E-6 : f32
      %37 = vector.broadcast %cst_30 : f32 to vector<1x4x1xf32>
      %38 = arith.addf %36, %37 : vector<1x4x1xf32>
      %39 = math.rsqrt %38 : vector<1x4x1xf32>
      %c0_31 = arith.constant 0 : index
      %c0_32 = arith.constant 0 : index
      %c0_33 = arith.constant 0 : index
      %40 = vector.load %arg2[%c0_31, %c0_32, %c0_33] : memref<1x4x1xf32, #tpu.memory_space<vmem>>, vector<1x4x1xf32>
      %41 = arith.mulf %40, %39 : vector<1x4x1xf32>
      %42 = vector.broadcast %41 : vector<1x4x1xf32> to vector<2x4x1xf32>
      %43 = arith.mulf %30, %42 : vector<2x4x1xf32>
      %c0_34 = arith.constant 0 : index
      %c0_35 = arith.constant 0 : index
      %c0_36 = arith.constant 0 : index
      %44 = vector.load %arg4[%c0_34, %c0_35, %c0_36] : memref<2x4x1xf32, #tpu.memory_space<vmem>>, vector<2x4x1xf32>
      tpu.vector_store %arg4[%c0_34, %c0_35, %c0_36], %43 {strides = array<i32>} : memref<2x4x1xf32, #tpu.memory_space<vmem>>, vector<2x4x1xf32>,
      %c0_37 = arith.constant 0 : index
      %c0_38 = arith.constant 0 : index
      %c0_39 = arith.constant 0 : index
      %45 = vector.load %arg3[%c0_37, %c0_38, %c0_39] : memref<1x4x1xf32, #tpu.memory_space<vmem>>, vector<1x4x1xf32>
      %46 = arith.mulf %20, %43 : vector<2x4x1xf32>
      %47 = vector.broadcast %45 : vector<1x4x1xf32> to vector<2x4x1xf32>
      %48 = arith.subf %47, %46 : vector<2x4x1xf32>
      %c0_40 = arith.constant 0 : index
      %c0_41 = arith.constant 0 : index
      %c0_42 = arith.constant 0 : index
      %49 = vector.load %arg5[%c0_40, %c0_41, %c0_42] : memref<2x4x1xf32, #tpu.memory_space<vmem>>, vector<2x4x1xf32>
      tpu.vector_store %arg5[%c0_40, %c0_41, %c0_42], %48 {strides = array<i32>} : memref<2x4x1xf32, #tpu.memory_space<vmem>>, vector<2x4x1xf32>,
    } else {
    }
    return
  }
  func.func @transform_0(%arg0: i32) -> (i32, i32, i32) {
    %c0_i32 = arith.constant 0 : i32
    %c0_i32_0 = arith.constant 0 : i32
    %c0_i32_1 = arith.constant 0 : i32
    return %c0_i32, %c0_i32_0, %arg0 : i32, i32, i32
  }
  func.func @transform_1(%arg0: i32) -> (i32, i32, i32) {
    %c0_i32 = arith.constant 0 : i32
    %c0_i32_0 = arith.constant 0 : i32
    %c0_i32_1 = arith.constant 0 : i32
    %c0_i32_2 = arith.constant 0 : i32
    return %c0_i32, %c0_i32_0, %c0_i32_1 : i32, i32, i32
  }
  func.func @transform_2(%arg0: i32) -> (i32, i32, i32) {
    %c0_i32 = arith.constant 0 : i32
    %c0_i32_0 = arith.constant 0 : i32
    %c0_i32_1 = arith.constant 0 : i32
    %c0_i32_2 = arith.constant 0 : i32
    return %c0_i32, %c0_i32_0, %c0_i32_1 : i32, i32, i32
  }
  func.func @transform_3(%arg0: i32) -> (i32, i32, i32) {
    %c0_i32 = arith.constant 0 : i32
    %c0_i32_0 = arith.constant 0 : i32
    %c0_i32_1 = arith.constant 0 : i32
    %c0_i32_2 = arith.constant 0 : i32
    return %c0_i32, %c0_i32_0, %c0_i32_1 : i32, i32, i32
  }
  func.func @transform_4(%arg0: i32) -> (i32, i32, i32) {
    %c0_i32 = arith.constant 0 : i32
    %c0_i32_0 = arith.constant 0 : i32
    %c0_i32_1 = arith.constant 0 : i32
    %c0_i32_2 = arith.constant 0 : i32
    return %c0_i32, %c0_i32_0, %c0_i32_1 : i32, i32, i32
  }
}

</mosaic_0001>

<llo_original>
// kernel: tpu_custom_call.1
$region0: #{tpu_custom_call.1}
  #allocation0 [shape = 'u32[]', space=smem, size = 0x4, offset = 0x4, fixed_abs, tag = 'smem constant byte address 0x4 - core index']
  #allocation1 [shape = 'u32[144,128]{1,0:T(1,128)}', space=vmem, size = 0x12000, scoped, tag = 'internal scratch']
  #allocation2 [shape = 'f32[2,4,1]{2,1,0:T(4,128)}', space=vmem, size = 0x1000, scoped, tag = 'scratch operand']
  #allocation3 [shape = 'f32[2,4,1]{2,1,0:T(4,128)}', space=vmem, size = 0x1000, scoped, tag = 'scratch operand']
  %s0 = inlined_call_operand.hbm [shape: f32[2,4,1024], index: 0, kind: input, shape index: {}]
  %s1 = inlined_call_operand.vmem [shape: f32[1,4,1], index: 1, kind: input, shape index: {}]
  %s2 = inlined_call_operand.vmem [shape: f32[1,4,1], index: 2, kind: input, shape index: {}]
  %s3 = inlined_call_operand.vmem [shape: f32[2,4,1], index: 3, kind: output, shape index: {0}]
  %s4 = inlined_call_operand.vmem [shape: f32[2,4,1], index: 4, kind: output, shape index: {1}]
  %5 = xla_tuple %s3, %s4
  %s6 = sld [smem:[#allocation0]]
  $region42: #{tpu_custom_call.1} parent=0
    _
  %s8 = ssub.s32 1, %s6
  %s9 = scalar_select 0, %s8, %s6
  $region1: #{tpu_custom_call.1} parent=0
    #allocation4 [shape = 'u8[32768]{0}', space=vmem, size = 0x8000, scoped, tag = 'input window, operand 0, single buffered']
    #allocation5 [shape = 's32[1]{0}', space=sflag, size = 0x4, scoped, tag = 'scoped memory for tpu_custom_call.1']
    %10 = vsyncpa [#allocation5], 0
    // Predicated region
    $region2: #{tpu_custom_call.1} parent=1 // pred_check
      _
    $region3: #{tpu_custom_call.1} parent=1 // pred_check_branch
      %12 = sbr.rel (0) target = $region5
    $region4: #{tpu_custom_call.1} parent=1 // pred_region
      %s14 = ssub.s32 1024, 1024
      %15 = vsyncadd [#allocation5], %s14
      %s16 = sshll.u32 [#allocation4], 4
      %s17 = int_to_ptr.vmem [resolvable:$true] %s16
      %22 = dma.hbm_to_vmem [thread:$0]  %s0, 1024, %s17, [#allocation5], 512, 512, 32
    $region5: #{tpu_custom_call.1} parent=1 // pred_fallthru
      _
    // Predicated region
    $region6: #{tpu_custom_call.1} parent=1 // pred_check
      _
    $region7: #{tpu_custom_call.1} parent=1 // pred_check_branch
      %24 = sbr.rel (0) target = $region9
    $region8: #{tpu_custom_call.1} parent=1 // pred_region
      _
    $region9: #{tpu_custom_call.1} parent=1 // pred_fallthru
      _
    // Predicated region
    $region10: #{tpu_custom_call.1} parent=1 // pred_check
      _
    $region11: #{tpu_custom_call.1} parent=1 // pred_check_branch
      %26 = sbr.rel (0) target = $region13
    $region12: #{tpu_custom_call.1} parent=1 // pred_region
      _
    $region13: #{tpu_custom_call.1} parent=1 // pred_fallthru
      _
    // Predicated region
    $region14: #{tpu_custom_call.1} parent=1 // pred_check
      _
    $region15: #{tpu_custom_call.1} parent=1 // pred_check_branch
      %28 = sbr.rel (0) target = $region17
    $region16: #{tpu_custom_call.1} parent=1 // pred_region
      %29 = dma.done [#allocation5], 1024
    $region17: #{tpu_custom_call.1} parent=1 // pred_fallthru
      _
    %p30 = scmp.eq.s32.totalorder 0, 0
    // Predicated region
    $region18: #{tpu_custom_call.1} parent=1 // pred_check
      %p31 = pneg %p30
    $region19: #{tpu_custom_call.1} parent=1 // pred_check_branch
      %33 = sbr.rel (%p31) target = $region21
    $region20: #{tpu_custom_call.1} parent=1 // pred_region
      %vm34 = vcmask 3072
      %35 = vst.msk [vmem:[#allocation2] sm:$0xf] %vm34, 0.0
      %36 = vst.msk [vmem:[#allocation2 + $0x4] sm:$0xf] %vm34, 0.0
      %37 = vst.msk [vmem:[#allocation3] sm:$0xf] %vm34, 0.0
      %38 = vst.msk [vmem:[#allocation3 + $0x4] sm:$0xf] %vm34, 0.0
    $region21: #{tpu_custom_call.1} parent=1 // pred_fallthru
      _
    %v39 = vld [vmem:[#allocation4] sm:$0xff]
    %v40 = vld [vmem:[#allocation4 + $0x8] sm:$0xff]
    %v41 = vld [vmem:[#allocation4 + $0x10] sm:$0xff]
    %v42 = vld [vmem:[#allocation4 + $0x18] sm:$0xff]
    %v43 = vld [vmem:[#allocation4 + $0x20] sm:$0xff]
    %v44 = vld [vmem:[#allocation4 + $0x28] sm:$0xff]
    %v45 = vld [vmem:[#allocation4 + $0x30] sm:$0xff]
    %v46 = vld [vmem:[#allocation4 + $0x38] sm:$0xff]
    %v47 = vld [vmem:[#allocation2] sm:$0xf]
    %v48 = vld [vmem:[#allocation2 + $0x4] sm:$0xf]
    %v57 = vcombine.high %v39, %v39
    %v58 = vcombine.high %v40, %v40
    %v59 = vcombine.high %v41, %v41
    %v60 = vcombine.high %v42, %v42
    %v61 = vcombine.high %v43, %v43
    %v62 = vcombine.high %v44, %v44
    %v63 = vcombine.high %v45, %v45
    %v64 = vcombine.high %v46, %v46
    %vm73 = vcmask 1043456
    %v74 = vsel %vm73, %v39, 0.0
    %v75 = vsel %vm73, %v57, 0.0
    %v76 = vadd.f32 %v74, %v75
    %v77 = vsel %vm73, %v40, 0.0
    %v78 = vadd.f32 %v76, %v77
    %v79 = vsel %vm73, %v58, 0.0
    %v80 = vadd.f32 %v78, %v79
    %v81 = vsel %vm73, %v41, 0.0
    %v82 = vadd.f32 %v80, %v81
    %v83 = vsel %vm73, %v59, 0.0
    %v84 = vadd.f32 %v82, %v83
    %v85 = vsel %vm73, %v42, 0.0
    %v86 = vadd.f32 %v84, %v85
    %v87 = vsel %vm73, %v60, 0.0
    %v88 = vadd.f32 %v86, %v87
    %89 = vadd.xlane.f32.xlu0 %v88
    %v90 = vpop.xlane.xlu0 %89
    %v91 = vsel %vm73, %v43, 0.0
    %v92 = vsel %vm73, %v61, 0.0
    %v93 = vadd.f32 %v91, %v92
    %v94 = vsel %vm73, %v44, 0.0
    %v95 = vadd.f32 %v93, %v94
    %v96 = vsel %vm73, %v62, 0.0
    %v97 = vadd.f32 %v95, %v96
    %v98 = vsel %vm73, %v45, 0.0
    %v99 = vadd.f32 %v97, %v98
    %v100 = vsel %vm73, %v63, 0.0
    %v101 = vadd.f32 %v99, %v100
    %v102 = vsel %vm73, %v46, 0.0
    %v103 = vadd.f32 %v101, %v102
    %v104 = vsel %vm73, %v64, 0.0
    %v105 = vadd.f32 %v103, %v104
    %106 = vadd.xlane.f32.xlu0 %v105
    %v107 = vpop.xlane.xlu0 %106
    %v108 = vadd.f32 %v47, %v90
    %v109 = vadd.f32 %v48, %v107
    %vm110 = vcmask 3072
    %111 = vst.msk [vmem:[#allocation2] sm:$0xf] %vm110, %v108
    %112 = vst.msk [vmem:[#allocation2 + $0x4] sm:$0xf] %vm110, %v109
    %v113 = vld [vmem:[#allocation3] sm:$0xf]
    %v114 = vld [vmem:[#allocation3 + $0x4] sm:$0xf]
    %v115 = vmul.f32 %v39, %v39
    %v116 = vmul.f32 %v40, %v40
    %v117 = vmul.f32 %v41, %v41
    %v118 = vmul.f32 %v42, %v42
    %v119 = vmul.f32 %v43, %v43
    %v120 = vmul.f32 %v44, %v44
    %v121 = vmul.f32 %v45, %v45
    %v122 = vmul.f32 %v46, %v46
    %v131 = vcombine.high %v115, %v115
    %v132 = vcombine.high %v116, %v116
    %v133 = vcombine.high %v117, %v117
    %v134 = vcombine.high %v118, %v118
    %v135 = vcombine.high %v119, %v119
    %v136 = vcombine.high %v120, %v120
    %v137 = vcombine.high %v121, %v121
    %v138 = vcombine.high %v122, %v122
    %v147 = vsel %vm73, %v115, 0.0
    %v148 = vsel %vm73, %v131, 0.0
    %v149 = vadd.f32 %v147, %v148
    %v150 = vsel %vm73, %v116, 0.0
    %v151 = vadd.f32 %v149, %v150
    %v152 = vsel %vm73, %v132, 0.0
    %v153 = vadd.f32 %v151, %v152
    %v154 = vsel %vm73, %v117, 0.0
    %v155 = vadd.f32 %v153, %v154
    %v156 = vsel %vm73, %v133, 0.0
    %v157 = vadd.f32 %v155, %v156
    %v158 = vsel %vm73, %v118, 0.0
    %v159 = vadd.f32 %v157, %v158
    %v160 = vsel %vm73, %v134, 0.0
    %v161 = vadd.f32 %v159, %v160
    %162 = vadd.xlane.f32.xlu0 %v161
    %v163 = vpop.xlane.xlu0 %162
    %v164 = vsel %vm73, %v119, 0.0
    %v165 = vsel %vm73, %v135, 0.0
    %v166 = vadd.f32 %v164, %v165
    %v167 = vsel %vm73, %v120, 0.0
    %v168 = vadd.f32 %v166, %v167
    %v169 = vsel %vm73, %v136, 0.0
    %v170 = vadd.f32 %v168, %v169
    %v171 = vsel %vm73, %v121, 0.0
    %v172 = vadd.f32 %v170, %v171
    %v173 = vsel %vm73, %v137, 0.0
    %v174 = vadd.f32 %v172, %v173
    %v175 = vsel %vm73, %v122, 0.0
    %v176 = vadd.f32 %v174, %v175
    %v177 = vsel %vm73, %v138, 0.0
    %v178 = vadd.f32 %v176, %v177
    %179 = vadd.xlane.f32.xlu0 %v178
    %v180 = vpop.xlane.xlu0 %179
    %v181 = vadd.f32 %v113, %v163
    %v182 = vadd.f32 %v114, %v180
    %183 = vst.msk [vmem:[#allocation3] sm:$0xf] %vm110, %v181
    %184 = vst.msk [vmem:[#allocation3 + $0x4] sm:$0xf] %vm110, %v182
    // Predicated region
    $region22: #{tpu_custom_call.1} parent=1 // pred_check
      %p185 = pneg %p30
    $region23: #{tpu_custom_call.1} parent=1 // pred_check_branch
      %187 = sbr.rel (%p185) target = $region25
    $region24: #{tpu_custom_call.1} parent=1 // pred_region
      %v188 = vld [vmem:[#allocation2] sm:$0xf]
      %v189 = vld [vmem:[#allocation2 + $0x4] sm:$0xf]
      %v190 = vmul.f32 %v188, 0.0009765625
      %v191 = vmul.f32 %v189, 0.0009765625
      %v192 = vld [vmem:[#allocation3] sm:$0xf]
      %v193 = vld [vmem:[#allocation3 + $0x4] sm:$0xf]
      %v194 = vmul.f32 %v192, 0.0009765625
      %v195 = vmul.f32 %v193, 0.0009765625
      %v196 = vmul.f32 %v190, %v190
      %v197 = vmul.f32 %v191, %v191
      %v198 = vsub.f32 %v194, %v196
      %v199 = vsub.f32 %v195, %v197
      %v200 = vmax.f32 %v198, 0.0
      %v201 = vmax.f32 %v199, 0.0
      %v202 = vadd.f32 %v200, 0.001
      %v203 = vadd.f32 %v201, 0.001
      %v204 = vrsqrt.pop %v202
      %v205 = vrsqrt.pop %v203
      %v206 = vmul.f32 %v200, %v204
      %v207 = vmul.f32 %v201, %v205
      %v208 = vmul.f32 %v206, %v204
      %v209 = vmul.f32 %v207, %v205
      %v210 = vsel %vm110, %v208, 0.0
      %v211 = vsel %vm110, %v209, 0.0
      %v212 = vadd.f32 %v210, %v211
      %v213 = vrcp.pop 2.0
      %v214 = vmul.f32 %v212, %v213
      %v215 = vadd.f32 %v214, 1e-05
      %v216 = vrsqrt.pop %v215
      %v217 = vld [vmem:[%s1] sm:$0xf]
      %v218 = vmul.f32 %v217, %v216
      %v219 = vmul.f32 %v204, %v218
      %v220 = vmul.f32 %v205, %v218
      %221 = vst.msk [vmem:[%s3] sm:$0xf] %vm110, %v219
      %222 = vst.msk [vmem:[%s3 + $0x4] sm:$0xf] %vm110, %v220
      %v223 = vld [vmem:[%s2] sm:$0xf]
      %v224 = vmul.f32 %v190, %v219
      %v225 = vmul.f32 %v191, %v220
      %v226 = vsub.f32 %v223, %v224
      %v227 = vsub.f32 %v223, %v225
      %228 = vst.msk [vmem:[%s4] sm:$0xf] %vm110, %v226
      %229 = vst.msk [vmem:[%s4 + $0x4] sm:$0xf] %vm110, %v227
    $region25: #{tpu_custom_call.1} parent=1 // pred_fallthru
      _
    // Predicated region
    $region26: #{tpu_custom_call.1} parent=1 // pred_check
      _
    $region27: #{tpu_custom_call.1} parent=1 // pred_check_branch
      %231 = sbr.rel (0) target = $region29
    $region28: #{tpu_custom_call.1} parent=1 // pred_region
      _
    $region29: #{tpu_custom_call.1} parent=1 // pred_fallthru
      _
    // Predicated region
    $region30: #{tpu_custom_call.1} parent=1 // pred_check
      _
    $region31: #{tpu_custom_call.1} parent=1 // pred_check_branch
      %233 = sbr.rel (0) target = $region33
    $region32: #{tpu_custom_call.1} parent=1 // pred_region
      _
    $region33: #{tpu_custom_call.1} parent=1 // pred_fallthru
      _
    // Predicated region
    $region34: #{tpu_custom_call.1} parent=1 // pred_check
      _
    $region35: #{tpu_custom_call.1} parent=1 // pred_check_branch
      %235 = sbr.rel (0) target = $region37
    $region36: #{tpu_custom_call.1} parent=1 // pred_region
      _
    $region37: #{tpu_custom_call.1} parent=1 // pred_fallthru
      _
    // Predicated region
    $region38: #{tpu_custom_call.1} parent=1 // pred_check
      _
    $region39: #{tpu_custom_call.1} parent=1 // pred_check_branch
      %237 = sbr.rel (0) target = $region41
    $region40: #{tpu_custom_call.1} parent=1 // pred_region
      _
    $region41: #{tpu_custom_call.1} parent=1 // pred_fallthru
      _
    %238 = vsyncpa [#allocation5], 1

</llo_original>
